<compile_context>
chip_gen: v7x
topology: tpu7x:2x2x1
jax: 0.10.0
libtpu: 0.0.40
codegen_flags: <defaults>
</compile_context>

<pallas_src>
import jax
import jax.numpy as jnp
from jax.experimental import pallas as pl
from jax.experimental.pallas import tpu as pltpu


def _round_up(x, m):
    return ((x + m - 1) // m) * m


def _choose_tile_b(batch, max_tile_b=1024):
    """Largest multiple-of-128 tile that divides round_up(B,128) (zero waste),
    capped so the grid has >= 2 steps when possible (v7x megacore)."""
    b128 = _round_up(batch, 128)              # minimal lane-aligned batch
    if b128 // 128 >= 2:
        cap = min(max_tile_b, _round_up(b128 // 2, 128))
    else:
        cap = min(max_tile_b, b128)
    tile_b = cap
    while tile_b > 128 and b128 % tile_b != 0:
        tile_b -= 128
    return tile_b, b128


def _vmem_limit_bytes(in_dim, h_pad, tile_b):
    """Rough VMEM budget: double-buffered operand blocks + f32/bf16 temps."""
    up = _round_up
    w_bytes = (up(h_pad, 16) * up(in_dim, 128) * 2      # W1 (bf16)
               + up(h_pad, 16) * up(h_pad, 128) * 2     # W2 (bf16)
               + 16 * up(h_pad, 128) * 2                # W3_pad (bf16, 8 rows)
               + up(h_pad, 8) * 128 * 4)                # b12 (f32)
    io_bytes = (up(in_dim, 16) * tile_b * 2             # x_t tile (bf16)
                + 8 * tile_b * 4)                       # out tile (f32)
    inter = h_pad * tile_b * (4 + 2) * 2                # h1/h2 f32 + bf16 copies
    total = 2 * (w_bytes + io_bytes) + inter            # 2x: pipeline buffering
    return int(min(max(total + (4 << 20), 24 << 20), 64 << 20))


def critic_kernel(x_ref, w1_ref, w2_ref, w3_ref, b12_ref, o_ref):
    # x_ref : (in_dim, TILE_B)  bf16   -- [state; action]^T tile, batch on lanes
    # w1_ref: (H_pad, in_dim)   bf16   -- PyTorch layer1 weight (out, in), padded
    # w2_ref: (H_pad, H_pad)    bf16
    # w3_ref: (8, H_pad)        bf16   -- row 0 real, rows 1..7 zero
    # b12   : (H_pad, 2)        f32    -- col 0 = b1, col 1 = b2
    # o_ref : (1, TILE_B)       f32    -- lane-dense q^T (bias b3 added outside)

    # ---- layer 1: relu(W1 @ x_t + b1), natural MXU orientation ----
    h1 = jnp.dot(w1_ref[...], x_ref[...], preferred_element_type=jnp.float32)
    h1 = jnp.maximum(h1 + b12_ref[:, 0:1], 0.0).astype(jnp.bfloat16)

    # ---- layer 2: relu(W2 @ h1 + b2) ----
    h2 = jnp.dot(w2_ref[...], h1, preferred_element_type=jnp.float32)
    h2 = jnp.maximum(h2 + b12_ref[:, 1:2], 0.0).astype(jnp.bfloat16)

    # ---- layer 3: W3_pad @ h2 -> (8, TILE_B); keep row 0, lane-dense store ----
    q_t = jnp.dot(w3_ref[...], h2, preferred_element_type=jnp.float32)
    o_ref[...] = q_t[0:1, :]


def critic_forward(state, action, params, *, max_tile_b=1024):
    """state: (B, state_dim), action: (B, action_dim) -> q: (B, 1) float32."""
    w1, b1, w2, b2, w3, b3 = params           # PyTorch (out, in) layouts
    batch, state_dim = state.shape
    action_dim = action.shape[1]
    hidden = w1.shape[0]
    in_dim = state_dim + action_dim
    h_pad = _round_up(hidden, 128)            # MXU-friendly hidden size

    tile_b, b_pad = _choose_tile_b(batch, max_tile_b)

    # Transposed + concatenated bf16 input: (in_dim, b_pad), batch on lanes.
    x_t = jnp.concatenate([state.T, action.T], axis=0).astype(jnp.bfloat16)
    if b_pad != batch:
        x_t = jnp.pad(x_t, ((0, 0), (0, b_pad - batch)))

    # Weight prep (one-time cost; zero-padded hidden units stay exactly zero).
    dh = h_pad - hidden
    w1_p = jnp.pad(w1.astype(jnp.bfloat16), ((0, dh), (0, 0)))          # (H_pad, in)
    w2_p = jnp.pad(w2.astype(jnp.bfloat16), ((0, dh), (0, dh)))         # (H_pad, H_pad)
    w3_p = jnp.pad(w3.astype(jnp.bfloat16), ((0, 7), (0, dh)))          # (8, H_pad)
    b12 = jnp.stack([jnp.pad(b1.astype(jnp.float32), (0, dh)),
                     jnp.pad(b2.astype(jnp.float32), (0, dh))], axis=1)  # (H_pad, 2)

    grid = (b_pad // tile_b,)

    def resident(shape):
        # Whole-array block, constant index map -> stays in VMEM across steps.
        return pl.BlockSpec(shape, lambda i: (0, 0))

    q_t = pl.pallas_call(
        critic_kernel,
        out_shape=jax.ShapeDtypeStruct((1, b_pad), jnp.float32),
        grid=grid,
        in_specs=[
            pl.BlockSpec((in_dim, tile_b), lambda i: (0, i)),   # x_t tile
            resident((h_pad, in_dim)),                          # W1
            resident((h_pad, h_pad)),                           # W2
            resident((8, h_pad)),                               # W3 (row-0 real)
            resident((h_pad, 2)),                               # b1|b2
        ],
        out_specs=pl.BlockSpec((1, tile_b), lambda i: (0, i)),
        compiler_params=pltpu.CompilerParams(
            dimension_semantics=("parallel",),
            vmem_limit_bytes=_vmem_limit_bytes(in_dim, h_pad, tile_b)),
    )(x_t, w1_p, w2_p, w3_p, b12)

    # (1, b_pad) -> (B, 1), add final-layer bias in the wrapper.
    return q_t[:, :batch].T + b3.astype(jnp.float32)


def init_critic_params(key, state_dim, action_dim, hidden_dim):
    """Kaiming-normal (fan_in, relu gain) weights + bias = 0.01, matching
    init_weights() in the PyTorch module.  Weights kept in PyTorch (out, in)
    layout, which is the natural orientation for the transposed kernel."""
    in_dim = state_dim + action_dim
    k1, k2, k3 = jax.random.split(key, 3)

    def kaiming(k, shape):
        fan_in = shape[1]
        return jax.random.normal(k, shape, dtype=jnp.float32) * jnp.sqrt(2.0 / fan_in)

    w1 = kaiming(k1, (hidden_dim, in_dim))
    b1 = jnp.full((hidden_dim,), 0.01, jnp.float32)
    w2 = kaiming(k2, (hidden_dim, hidden_dim))
    b2 = jnp.full((hidden_dim,), 0.01, jnp.float32)
    w3 = kaiming(k3, (1, hidden_dim))
    b3 = jnp.full((1, 1), 0.01, jnp.float32)
    return (w1, b1, w2, b2, w3, b3)


def critic_reference(state, action, params):
    """Pure-JAX reference mirroring the kernel's numerics (bf16 MXU inputs,
    f32 accumulation) — mathematically the PyTorch forward."""
    w1, b1, w2, b2, w3, b3 = params
    x = jnp.concatenate([state, action], axis=1).astype(jnp.bfloat16)
    h1 = jnp.dot(x, w1.astype(jnp.bfloat16).T,
                 preferred_element_type=jnp.float32) + b1
    h1 = jnp.maximum(h1, 0.0).astype(jnp.bfloat16)
    h2 = jnp.dot(h1, w2.astype(jnp.bfloat16).T,
                 preferred_element_type=jnp.float32) + b2
    h2 = jnp.maximum(h2, 0.0).astype(jnp.bfloat16)
    q = jnp.dot(h2, w3.astype(jnp.bfloat16).T,
                preferred_element_type=jnp.float32) + b3
    return q


if __name__ == "__main__":
    batch, state_dim, action_dim, hidden_dim = 2, 8, 4, 32

    key = jax.random.PRNGKey(0)
    k_state, k_action, k_params = jax.random.split(key, 3)

    state = jax.random.normal(k_state, (batch, state_dim), dtype=jnp.float32)
    action = jax.random.normal(k_action, (batch, action_dim), dtype=jnp.float32)
    params = init_critic_params(k_params, state_dim, action_dim, hidden_dim)

    q = jax.block_until_ready(critic_forward(state, action, params))
    q_ref = critic_reference(state, action, params)

    assert q.shape == (batch, 1)
    assert jnp.allclose(q, q_ref, atol=1e-3, rtol=1e-3), (q, q_ref)

    print("KERNEL_OK")
</pallas_src>

<mosaic_0001>
module attributes {stable_mosaic.version = 11 : i64} {
  func.func @critic_kernel(%arg0: i32, %arg1: memref<12x128xbf16, #tpu.memory_space<vmem>>, %arg2: memref<128x12xbf16, #tpu.memory_space<vmem>>, %arg3: memref<128x128xbf16, #tpu.memory_space<vmem>>, %arg4: memref<8x128xbf16, #tpu.memory_space<vmem>>, %arg5: memref<128x2xf32, #tpu.memory_space<vmem>>, %arg6: memref<1x128xf32, #tpu.memory_space<vmem>>) attributes {dimension_semantics = [#tpu.dimension_semantics<parallel>], iteration_bounds = array<i64: 1>, scalar_prefetch = 0 : i64, scratch_operands = 0 : i64, tpu.core_type = #tpu.core_type<tc>, window_params = [{transform_indices = @transform_0, window_bounds = array<i64: 12, 128>}, {pipeline_mode = #tpu.pipeline_mode<synchronous>, transform_indices = @transform_1, window_bounds = array<i64: 128, 12>}, {pipeline_mode = #tpu.pipeline_mode<synchronous>, transform_indices = @transform_2, window_bounds = array<i64: 128, 128>}, {pipeline_mode = #tpu.pipeline_mode<synchronous>, transform_indices = @transform_3, window_bounds = array<i64: 8, 128>}, {pipeline_mode = #tpu.pipeline_mode<synchronous>, transform_indices = @transform_4, window_bounds = array<i64: 128, 2>}, {transform_indices = @transform_5, window_bounds = array<i64: 1, 128>}]} {
    %c0 = arith.constant 0 : index
    %c0_0 = arith.constant 0 : index
    %0 = vector.load %arg2[%c0, %c0_0] : memref<128x12xbf16, #tpu.memory_space<vmem>>, vector<128x12xbf16>
    %c0_1 = arith.constant 0 : index
    %c0_2 = arith.constant 0 : index
    %1 = vector.load %arg1[%c0_1, %c0_2] : memref<12x128xbf16, #tpu.memory_space<vmem>>, vector<12x128xbf16>
    %cst = arith.constant dense<0.000000e+00> : vector<128x128xf32>
    %2 = tpu.matmul %0, %1, %cst {dimension_numbers = #tpu.dot_dimension_numbers<[1], [0], [0], [1], [0, 0, 1, 1], [], []>} : vector<128x12xbf16>, vector<12x128xbf16>, vector<128x128xf32> -> vector<128x128xf32>
    %c0_3 = arith.constant 0 : index
    %c0_4 = arith.constant 0 : index
    %3 = vector.load %arg5[%c0_3, %c0_4] : memref<128x2xf32, #tpu.memory_space<vmem>>, vector<128x1xf32>
    %4 = vector.broadcast %3 : vector<128x1xf32> to vector<128x128xf32>
    %5 = arith.addf %2, %4 : vector<128x128xf32>
    %cst_5 = arith.constant 0.000000e+00 : f32
    %6 = vector.broadcast %cst_5 : f32 to vector<128x128xf32>
    %7 = arith.maximumf %5, %6 : vector<128x128xf32>
    %8 = arith.truncf %7 : vector<128x128xf32> to vector<128x128xbf16>
    %c0_6 = arith.constant 0 : index
    %c0_7 = arith.constant 0 : index
    %9 = vector.load %arg3[%c0_6, %c0_7] : memref<128x128xbf16, #tpu.memory_space<vmem>>, vector<128x128xbf16>
    %cst_8 = arith.constant dense<0.000000e+00> : vector<128x128xf32>
    %10 = tpu.matmul %9, %8, %cst_8 {dimension_numbers = #tpu.dot_dimension_numbers<[1], [0], [0], [1], [0, 0, 1, 1], [], []>} : vector<128x128xbf16>, vector<128x128xbf16>, vector<128x128xf32> -> vector<128x128xf32>
    %c0_9 = arith.constant 0 : index
    %c1 = arith.constant 1 : index
    %11 = vector.load %arg5[%c0_9, %c1] : memref<128x2xf32, #tpu.memory_space<vmem>>, vector<128x1xf32>
    %12 = vector.broadcast %11 : vector<128x1xf32> to vector<128x128xf32>
    %13 = arith.addf %10, %12 : vector<128x128xf32>
    %cst_10 = arith.constant 0.000000e+00 : f32
    %14 = vector.broadcast %cst_10 : f32 to vector<128x128xf32>
    %15 = arith.maximumf %13, %14 : vector<128x128xf32>
    %16 = arith.truncf %15 : vector<128x128xf32> to vector<128x128xbf16>
    %c0_11 = arith.constant 0 : index
    %c0_12 = arith.constant 0 : index
    %17 = vector.load %arg4[%c0_11, %c0_12] : memref<8x128xbf16, #tpu.memory_space<vmem>>, vector<8x128xbf16>
    %cst_13 = arith.constant dense<0.000000e+00> : vector<8x128xf32>
    %18 = tpu.matmul %17, %16, %cst_13 {dimension_numbers = #tpu.dot_dimension_numbers<[1], [0], [0], [1], [0, 0, 1, 1], [], []>} : vector<8x128xbf16>, vector<128x128xbf16>, vector<8x128xf32> -> vector<8x128xf32>
    %19 = vector.extract_strided_slice %18 {offsets = [0, 0], sizes = [1, 128], strides = [1, 1]} : vector<8x128xf32> to vector<1x128xf32>
    %c0_14 = arith.constant 0 : index
    %c0_15 = arith.constant 0 : index
    %20 = vector.load %arg6[%c0_14, %c0_15] : memref<1x128xf32, #tpu.memory_space<vmem>>, vector<1x128xf32>
    tpu.vector_store %arg6[%c0_14, %c0_15], %19 {strides = array<i32>} : memref<1x128xf32, #tpu.memory_space<vmem>>, vector<1x128xf32>,
    return
  }
  func.func @transform_0(%arg0: i32) -> (i32, i32) {
    %c0_i32 = arith.constant 0 : i32
    %c0_i32_0 = arith.constant 0 : i32
    return %c0_i32, %arg0 : i32, i32
  }
  func.func @transform_1(%arg0: i32) -> (i32, i32) {
    %c0_i32 = arith.constant 0 : i32
    %c0_i32_0 = arith.constant 0 : i32
    %c0_i32_1 = arith.constant 0 : i32
    return %c0_i32, %c0_i32_0 : i32, i32
  }
  func.func @transform_2(%arg0: i32) -> (i32, i32) {
    %c0_i32 = arith.constant 0 : i32
    %c0_i32_0 = arith.constant 0 : i32
    %c0_i32_1 = arith.constant 0 : i32
    return %c0_i32, %c0_i32_0 : i32, i32
  }
  func.func @transform_3(%arg0: i32) -> (i32, i32) {
    %c0_i32 = arith.constant 0 : i32
    %c0_i32_0 = arith.constant 0 : i32
    %c0_i32_1 = arith.constant 0 : i32
    return %c0_i32, %c0_i32_0 : i32, i32
  }
  func.func @transform_4(%arg0: i32) -> (i32, i32) {
    %c0_i32 = arith.constant 0 : i32
    %c0_i32_0 = arith.constant 0 : i32
    %c0_i32_1 = arith.constant 0 : i32
    return %c0_i32, %c0_i32_0 : i32, i32
  }
  func.func @transform_5(%arg0: i32) -> (i32, i32) {
    %c0_i32 = arith.constant 0 : i32
    %c0_i32_0 = arith.constant 0 : i32
    return %c0_i32, %arg0 : i32, i32
  }
}

</mosaic_0001>

<llo_original>
// kernel: tpu_custom_call.1
$region0: #{tpu_custom_call.1}
  #allocation0 [shape = 'u32[]', space=smem, size = 0x4, offset = 0x4, fixed_abs, tag = 'smem constant byte address 0x4 - core index']
  #allocation1 [shape = 'u32[144,128]{1,0:T(1,128)}', space=vmem, size = 0x12000, scoped, tag = 'internal scratch']
  %s0 = inlined_call_operand.vmem [shape: bf16[12,128], index: 0, kind: input, shape index: {}]
  %s1 = inlined_call_operand.vmem [shape: bf16[128,12], index: 1, kind: input, shape index: {}]
  %s2 = inlined_call_operand.vmem [shape: bf16[128,128], index: 2, kind: input, shape index: {}]
  %s3 = inlined_call_operand.vmem [shape: bf16[8,128], index: 3, kind: input, shape index: {}]
  %s4 = inlined_call_operand.vmem [shape: f32[128,2], index: 4, kind: input, shape index: {}]
  %s5 = inlined_call_operand.hbm [shape: f32[1,128], index: 5, kind: output, shape index: {}]
  %s6 = sld [smem:[#allocation0]]
  $region30: #{tpu_custom_call.1} parent=0
    _
  %s8 = ssub.s32 1, %s6
  %s9 = scalar_select 0, %s8, %s6
  $region1: #{tpu_custom_call.1} parent=0
    #allocation2 [shape = 'u8[512]{0}', space=vmem, size = 0x400, scoped, tag = 'output window, operand 0, single buffered']
    #allocation3 [shape = 's32[1]{0}', space=sflag, size = 0x4, scoped, tag = 'scoped memory for tpu_custom_call.1']
    %10 = vsyncpa [#allocation3], 0
    // Predicated region
    $region2: #{tpu_custom_call.1} parent=1 // pred_check
      _
    $region3: #{tpu_custom_call.1} parent=1 // pred_check_branch
      %12 = sbr.rel (0) target = $region5
    $region4: #{tpu_custom_call.1} parent=1 // pred_region
      _
    $region5: #{tpu_custom_call.1} parent=1 // pred_fallthru
      _
    // Predicated region
    $region6: #{tpu_custom_call.1} parent=1 // pred_check
      _
    $region7: #{tpu_custom_call.1} parent=1 // pred_check_branch
      %14 = sbr.rel (0) target = $region9
    $region8: #{tpu_custom_call.1} parent=1 // pred_region
      _
    $region9: #{tpu_custom_call.1} parent=1 // pred_fallthru
      _
    // Predicated region
    $region10: #{tpu_custom_call.1} parent=1 // pred_check
      _
    $region11: #{tpu_custom_call.1} parent=1 // pred_check_branch
      %16 = sbr.rel (0) target = $region13
    $region12: #{tpu_custom_call.1} parent=1 // pred_region
      _
    $region13: #{tpu_custom_call.1} parent=1 // pred_fallthru
      _
    // Predicated region
    $region14: #{tpu_custom_call.1} parent=1 // pred_check
      _
    $region15: #{tpu_custom_call.1} parent=1 // pred_check_branch
      %18 = sbr.rel (0) target = $region17
    $region16: #{tpu_custom_call.1} parent=1 // pred_region
      _
    $region17: #{tpu_custom_call.1} parent=1 // pred_fallthru
      _
    // Predicated region
    $region18: #{tpu_custom_call.1} parent=1 // pred_check
      _
    $region19: #{tpu_custom_call.1} parent=1 // pred_check_branch
      %20 = sbr.rel (0) target = $region21
    $region20: #{tpu_custom_call.1} parent=1 // pred_region
      _
    $region21: #{tpu_custom_call.1} parent=1 // pred_fallthru
      _
    %v22 = vld [vmem:[%s1] sm:$0xf]
    %v23 = vld [vmem:[%s1 + $0x4] sm:$0xf]
    %v24 = vld [vmem:[%s1 + $0x8] sm:$0xf]
    %v25 = vld [vmem:[%s1 + $0xc] sm:$0xf]
    %v26 = vld [vmem:[%s1 + $0x10] sm:$0xf]
    %v27 = vld [vmem:[%s1 + $0x14] sm:$0xf]
    %v28 = vld [vmem:[%s1 + $0x18] sm:$0xf]
    %v29 = vld [vmem:[%s1 + $0x1c] sm:$0xf]
    %v30 = vld [vmem:[%s1 + $0x20] sm:$0xf]
    %v31 = vld [vmem:[%s1 + $0x24] sm:$0xf]
    %v32 = vld [vmem:[%s1 + $0x28] sm:$0xf]
    %v33 = vld [vmem:[%s1 + $0x2c] sm:$0xf]
    %v34 = vld [vmem:[%s1 + $0x30] sm:$0xf]
    %v35 = vld [vmem:[%s1 + $0x34] sm:$0xf]
    %v36 = vld [vmem:[%s1 + $0x38] sm:$0xf]
    %v37 = vld [vmem:[%s1 + $0x3c] sm:$0xf]
    %v38 = vld [vmem:[%s0] sm:$0xf]
    %v39 = vld [vmem:[%s0 + $0x4] sm:$0x3]
    %v40 = vld [vmem:[%s4] sm:$0xff]
    %v41 = vld [vmem:[%s4 + $0x8] sm:$0xff]
    %v42 = vld [vmem:[%s4 + $0x10] sm:$0xff]
    %v43 = vld [vmem:[%s4 + $0x18] sm:$0xff]
    %v44 = vld [vmem:[%s4 + $0x20] sm:$0xff]
    %v45 = vld [vmem:[%s4 + $0x28] sm:$0xff]
    %v46 = vld [vmem:[%s4 + $0x30] sm:$0xff]
    %v47 = vld [vmem:[%s4 + $0x38] sm:$0xff]
    %v48 = vld [vmem:[%s4 + $0x40] sm:$0xff]
    %v49 = vld [vmem:[%s4 + $0x48] sm:$0xff]
    %v50 = vld [vmem:[%s4 + $0x50] sm:$0xff]
    %v51 = vld [vmem:[%s4 + $0x58] sm:$0xff]
    %v52 = vld [vmem:[%s4 + $0x60] sm:$0xff]
    %v53 = vld [vmem:[%s4 + $0x68] sm:$0xff]
    %v54 = vld [vmem:[%s4 + $0x70] sm:$0xff]
    %v55 = vld [vmem:[%s4 + $0x78] sm:$0xff]
    %57 = vset.pattern.permute.xlu0 0
    %58 = vperm.xlu0 %57, %v40
    %v59 = vpop.permute.xlu0 %58
    %62 = vset.pattern.permute.xlu0 0
    %63 = vperm.xlu0 %62, %v41
    %v64 = vpop.permute.xlu0 %63
    %67 = vset.pattern.permute.xlu0 0
    %68 = vperm.xlu0 %67, %v42
    %v69 = vpop.permute.xlu0 %68
    %72 = vset.pattern.permute.xlu0 0
    %73 = vperm.xlu0 %72, %v43
    %v74 = vpop.permute.xlu0 %73
    %77 = vset.pattern.permute.xlu0 0
    %78 = vperm.xlu0 %77, %v44
    %v79 = vpop.permute.xlu0 %78
    %82 = vset.pattern.permute.xlu0 0
    %83 = vperm.xlu0 %82, %v45
    %v84 = vpop.permute.xlu0 %83
    %87 = vset.pattern.permute.xlu0 0
    %88 = vperm.xlu0 %87, %v46
    %v89 = vpop.permute.xlu0 %88
    %92 = vset.pattern.permute.xlu0 0
    %93 = vperm.xlu0 %92, %v47
    %v94 = vpop.permute.xlu0 %93
    %97 = vset.pattern.permute.xlu0 0
    %98 = vperm.xlu0 %97, %v48
    %v99 = vpop.permute.xlu0 %98
    %102 = vset.pattern.permute.xlu0 0
    %103 = vperm.xlu0 %102, %v49
    %v104 = vpop.permute.xlu0 %103
    %107 = vset.pattern.permute.xlu0 0
    %108 = vperm.xlu0 %107, %v50
    %v109 = vpop.permute.xlu0 %108
    %112 = vset.pattern.permute.xlu0 0
    %113 = vperm.xlu0 %112, %v51
    %v114 = vpop.permute.xlu0 %113
    %117 = vset.pattern.permute.xlu0 0
    %118 = vperm.xlu0 %117, %v52
    %v119 = vpop.permute.xlu0 %118
    %122 = vset.pattern.permute.xlu0 0
    %123 = vperm.xlu0 %122, %v53
    %v124 = vpop.permute.xlu0 %123
    %127 = vset.pattern.permute.xlu0 0
    %128 = vperm.xlu0 %127, %v54
    %v129 = vpop.permute.xlu0 %128
    %132 = vset.pattern.permute.xlu0 0
    %133 = vperm.xlu0 %132, %v55
    %v134 = vpop.permute.xlu0 %133
    %v152 = vunpack.c.l.b16 %v22
    %v153 = vunpack.c.l.b16 %v23
    %v154 = vunpack.c.l.b16 %v24
    %v155 = vunpack.c.l.b16 %v25
    %v156 = vunpack.c.l.b16 %v26
    %v157 = vunpack.c.l.b16 %v27
    %v158 = vunpack.c.l.b16 %v28
    %v159 = vunpack.c.l.b16 %v29
    %v160 = vunpack.c.l.b16 %v30
    %v161 = vunpack.c.l.b16 %v31
    %v162 = vunpack.c.l.b16 %v32
    %v163 = vunpack.c.l.b16 %v33
    %v164 = vunpack.c.l.b16 %v34
    %v165 = vunpack.c.l.b16 %v35
    %v166 = vunpack.c.l.b16 %v36
    %v167 = vunpack.c.l.b16 %v37
    %v168 = vpack.c.b16 %v153, %v152
    %v169 = vpack.c.b16 %v155, %v154
    %v170 = vpack.c.b16 %v157, %v156
    %v171 = vpack.c.b16 %v159, %v158
    %v172 = vpack.c.b16 %v161, %v160
    %v173 = vpack.c.b16 %v163, %v162
    %v174 = vpack.c.b16 %v165, %v164
    %v175 = vpack.c.b16 %v167, %v166
    %v178 = vunpack.c.l.b16 %v38
    %v179 = vunpack.c.l.b16 %v39
    %v180 = vpack.c.b16 %v179, %v178
    %vm181 = vcmask 97280
    %v183 = vsel %vm181, %v168, 0
    %v186 = vsel %vm181, %v169, 0
    %v189 = vsel %vm181, %v170, 0
    %v192 = vsel %vm181, %v171, 0
    %v195 = vsel %vm181, %v172, 0
    %v198 = vsel %vm181, %v173, 0
    %v201 = vsel %vm181, %v174, 0
    %v204 = vsel %vm181, %v175, 0
    %vm206 = vcmask 1045504
    %v208 = vsel %vm206, %v180, 0
    %210 = vmatprep.subr.bf16.mxu0 0
    %211 = vmatpush1.bf16.msra.mxu0 %v208
    %212 = vmatprep.subr.bf16.mxu0 0
    %213 = vmatpush1.bf16.msra.mxu0 0
    %214 = vmatprep.subr.bf16.mxu0 0
    %215 = vmatpush1.bf16.msra.mxu0 0
    %216 = vmatprep.subr.bf16.mxu0 0
    %217 = vmatpush1.bf16.msra.mxu0 0
    %218 = vmatprep.subr.bf16.mxu0 0
    %219 = vmatpush1.bf16.msra.mxu0 0
    %220 = vmatprep.subr.bf16.mxu0 0
    %221 = vmatpush1.bf16.msra.mxu0 0
    %222 = vmatprep.subr.bf16.mxu0 0
    %223 = vmatpush1.bf16.msra.mxu0 0
    %224 = vmatprep.subr.bf16.mxu0 0
    %225 = vmatpush1.bf16.msra.mxu0 0
    %226 = vmatprep.subr.bf16.mxu0 0
    %227 = vmatpush1.bf16.msra.mxu0 0
    %228 = vmatprep.subr.bf16.mxu0 0
    %229 = vmatpush1.bf16.msra.mxu0 0
    %230 = vmatprep.subr.bf16.mxu0 0
    %231 = vmatpush1.bf16.msra.mxu0 0
    %232 = vmatprep.subr.bf16.mxu0 0
    %233 = vmatpush1.bf16.msra.mxu0 0
    %234 = vmatprep.subr.bf16.mxu0 0
    %235 = vmatpush1.bf16.msra.mxu0 0
    %236 = vmatprep.subr.bf16.mxu0 0
    %237 = vmatpush1.bf16.msra.mxu0 0
    %238 = vmatprep.subr.bf16.mxu0 0
    %239 = vmatpush1.bf16.msra.mxu0 0
    %240 = vmatprep.subr.bf16.mxu0 0
    %241 = vmatpush1.bf16.msra.mxu0 0
    %242 = vmatprep.mubr.bf16.mxu0 0
    %243 = vmatmul.mubr.bf16.gmra.mrb[0].mxu0 %v183
    %v244 = vpop.f32.mrb[0].mxu0
    %v245 = vadd.f32 %v59, %v244
    %v246 = vpop.f32.mrb[0].mxu0
    %v247 = vpop.f32.mrb[0].mxu0
    %v248 = vadd.f32 %v64, %v247
    %v249 = vpop.f32.mrb[0].mxu0
    %250 = vmatprep.mubr.bf16.mxu0 0
    %251 = vmatmul.mubr.bf16.gmra.mrb[0].mxu0 %v186
    %v252 = vpop.f32.mrb[0].mxu0
    %v253 = vadd.f32 %v69, %v252
    %v254 = vpop.f32.mrb[0].mxu0
    %v255 = vpop.f32.mrb[0].mxu0
    %v256 = vadd.f32 %v74, %v255
    %v257 = vpop.f32.mrb[0].mxu0
    %258 = vmatprep.mubr.bf16.mxu0 0
    %259 = vmatmul.mubr.bf16.gmra.mrb[0].mxu0 %v189
    %v260 = vpop.f32.mrb[0].mxu0
    %v261 = vadd.f32 %v79, %v260
    %v262 = vpop.f32.mrb[0].mxu0
    %v263 = vpop.f32.mrb[0].mxu0
    %v264 = vadd.f32 %v84, %v263
    %v265 = vpop.f32.mrb[0].mxu0
    %266 = vmatprep.mubr.bf16.mxu0 0
    %267 = vmatmul.mubr.bf16.gmra.mrb[0].mxu0 %v192
    %v268 = vpop.f32.mrb[0].mxu0
    %v269 = vadd.f32 %v89, %v268
    %v270 = vpop.f32.mrb[0].mxu0
    %v271 = vpop.f32.mrb[0].mxu0
    %v272 = vadd.f32 %v94, %v271
    %v273 = vpop.f32.mrb[0].mxu0
    %274 = vmatprep.mubr.bf16.mxu0 0
    %275 = vmatmul.mubr.bf16.gmra.mrb[0].mxu0 %v195
    %v276 = vpop.f32.mrb[0].mxu0
    %v277 = vadd.f32 %v99, %v276
    %v278 = vpop.f32.mrb[0].mxu0
    %v279 = vpop.f32.mrb[0].mxu0
    %v280 = vadd.f32 %v104, %v279
    %v281 = vpop.f32.mrb[0].mxu0
    %282 = vmatprep.mubr.bf16.mxu0 0
    %283 = vmatmul.mubr.bf16.gmra.mrb[0].mxu0 %v198
    %v284 = vpop.f32.mrb[0].mxu0
    %v285 = vadd.f32 %v109, %v284
    %v286 = vpop.f32.mrb[0].mxu0
    %v287 = vpop.f32.mrb[0].mxu0
    %v288 = vadd.f32 %v114, %v287
    %v289 = vpop.f32.mrb[0].mxu0
    %290 = vmatprep.mubr.bf16.mxu0 0
    %291 = vmatmul.mubr.bf16.gmra.mrb[0].mxu0 %v201
    %v292 = vpop.f32.mrb[0].mxu0
    %v293 = vadd.f32 %v119, %v292
    %v294 = vpop.f32.mrb[0].mxu0
    %v295 = vpop.f32.mrb[0].mxu0
    %v296 = vadd.f32 %v124, %v295
    %v297 = vpop.f32.mrb[0].mxu0
    %298 = vmatprep.mubr.bf16.mxu0 0
    %299 = vmatmul.mubr.bf16.gmra.mrb[0].mxu0 %v204
    %v300 = vpop.f32.mrb[0].mxu0
    %v301 = vadd.f32 %v129, %v300
    %v302 = vpop.f32.mrb[0].mxu0
    %v303 = vpop.f32.mrb[0].mxu0
    %v304 = vadd.f32 %v134, %v303
    %v305 = vpop.f32.mrb[0].mxu0
    %306 = vdwg.mxu0
    %v307 = vmax.f32 %v245, 0.0
    %v308 = vmax.f32 %v248, 0.0
    %v309 = vmax.f32 %v253, 0.0
    %v310 = vmax.f32 %v256, 0.0
    %v311 = vmax.f32 %v261, 0.0
    %v312 = vmax.f32 %v264, 0.0
    %v313 = vmax.f32 %v269, 0.0
    %v314 = vmax.f32 %v272, 0.0
    %v315 = vmax.f32 %v277, 0.0
    %v316 = vmax.f32 %v280, 0.0
    %v317 = vmax.f32 %v285, 0.0
    %v318 = vmax.f32 %v288, 0.0
    %v319 = vmax.f32 %v293, 0.0
    %v320 = vmax.f32 %v296, 0.0
    %v321 = vmax.f32 %v301, 0.0
    %v322 = vmax.f32 %v304, 0.0
    %v323 = vpack.c.bf16 %v308, %v307
    %v324 = vpack.c.bf16 %v310, %v309
    %v325 = vpack.c.bf16 %v312, %v311
    %v326 = vpack.c.bf16 %v314, %v313
    %v327 = vpack.c.bf16 %v316, %v315
    %v328 = vpack.c.bf16 %v318, %v317
    %v329 = vpack.c.bf16 %v320, %v319
    %v330 = vpack.c.bf16 %v322, %v321
    %v331 = vld [vmem:[%s2] sm:$0xf]
    %v332 = vld [vmem:[%s2 + $0x4] sm:$0xf]
    %v333 = vld [vmem:[%s2 + $0x8] sm:$0xf]
    %v334 = vld [vmem:[%s2 + $0xc] sm:$0xf]
    %v335 = vld [vmem:[%s2 + $0x10] sm:$0xf]
    %v336 = vld [vmem:[%s2 + $0x14] sm:$0xf]
    %v337 = vld [vmem:[%s2 + $0x18] sm:$0xf]
    %v338 = vld [vmem:[%s2 + $0x1c] sm:$0xf]
    %v339 = vld [vmem:[%s2 + $0x20] sm:$0xf]
    %v340 = vld [vmem:[%s2 + $0x24] sm:$0xf]
    %v341 = vld [vmem:[%s2 + $0x28] sm:$0xf]
    %v342 = vld [vmem:[%s2 + $0x2c] sm:$0xf]
    %v343 = vld [vmem:[%s2 + $0x30] sm:$0xf]
    %v344 = vld [vmem:[%s2 + $0x34] sm:$0xf]
    %v345 = vld [vmem:[%s2 + $0x38] sm:$0xf]
    %v346 = vld [vmem:[%s2 + $0x3c] sm:$0xf]
    %347 = vset.pattern.permute.xlu0 1
    %348 = vperm.xlu0 %347, %v40
    %v349 = vpop.permute.xlu0 %348
    %351 = vset.pattern.permute.xlu0 1
    %352 = vperm.xlu0 %351, %v41
    %v353 = vpop.permute.xlu0 %352
    %355 = vset.pattern.permute.xlu0 1
    %356 = vperm.xlu0 %355, %v42
    %v357 = vpop.permute.xlu0 %356
    %359 = vset.pattern.permute.xlu0 1
    %360 = vperm.xlu0 %359, %v43
    %v361 = vpop.permute.xlu0 %360
    %363 = vset.pattern.permute.xlu0 1
    %364 = vperm.xlu0 %363, %v44
    %v365 = vpop.permute.xlu0 %364
    %367 = vset.pattern.permute.xlu0 1
    %368 = vperm.xlu0 %367, %v45
    %v369 = vpop.permute.xlu0 %368
    %371 = vset.pattern.permute.xlu0 1
    %372 = vperm.xlu0 %371, %v46
    %v373 = vpop.permute.xlu0 %372
    %375 = vset.pattern.permute.xlu0 1
    %376 = vperm.xlu0 %375, %v47
    %v377 = vpop.permute.xlu0 %376
    %379 = vset.pattern.permute.xlu0 1
    %380 = vperm.xlu0 %379, %v48
    %v381 = vpop.permute.xlu0 %380
    %383 = vset.pattern.permute.xlu0 1
    %384 = vperm.xlu0 %383, %v49
    %v385 = vpop.permute.xlu0 %384
    %387 = vset.pattern.permute.xlu0 1
    %388 = vperm.xlu0 %387, %v50
    %v389 = vpop.permute.xlu0 %388
    %391 = vset.pattern.permute.xlu0 1
    %392 = vperm.xlu0 %391, %v51
    %v393 = vpop.permute.xlu0 %392
    %395 = vset.pattern.permute.xlu0 1
    %396 = vperm.xlu0 %395, %v52
    %v397 = vpop.permute.xlu0 %396
    %399 = vset.pattern.permute.xlu0 1
    %400 = vperm.xlu0 %399, %v53
    %v401 = vpop.permute.xlu0 %400
    %403 = vset.pattern.permute.xlu0 1
    %404 = vperm.xlu0 %403, %v54
    %v405 = vpop.permute.xlu0 %404
    %407 = vset.pattern.permute.xlu0 1
    %408 = vperm.xlu0 %407, %v55
    %v409 = vpop.permute.xlu0 %408
    %v427 = vunpack.c.l.b16 %v331
    %v428 = vunpack.c.l.b16 %v332
    %v429 = vunpack.c.l.b16 %v333
    %v430 = vunpack.c.l.b16 %v334
    %v431 = vunpack.c.l.b16 %v335
    %v432 = vunpack.c.l.b16 %v336
    %v433 = vunpack.c.l.b16 %v337
    %v434 = vunpack.c.l.b16 %v338
    %v435 = vunpack.c.l.b16 %v339
    %v436 = vunpack.c.l.b16 %v340
    %v437 = vunpack.c.l.b16 %v341
    %v438 = vunpack.c.l.b16 %v342
    %v439 = vunpack.c.l.b16 %v343
    %v440 = vunpack.c.l.b16 %v344
    %v441 = vunpack.c.l.b16 %v345
    %v442 = vunpack.c.l.b16 %v346
    %v443 = vpack.c.b16 %v428, %v427
    %v444 = vpack.c.b16 %v430, %v429
    %v445 = vpack.c.b16 %v432, %v431
    %v446 = vpack.c.b16 %v434, %v433
    %v447 = vpack.c.b16 %v436, %v435
    %v448 = vpack.c.b16 %v438, %v437
    %v449 = vpack.c.b16 %v440, %v439
    %v450 = vpack.c.b16 %v442, %v441
    %459 = vmatprep.subr.bf16.mxu0 0
    %460 = vmatpush1.bf16.msra.mxu0 %v323
    %461 = vmatprep.subr.bf16.mxu0 0
    %462 = vmatpush1.bf16.msra.mxu0 %v324
    %463 = vmatprep.subr.bf16.mxu0 0
    %464 = vmatpush1.bf16.msra.mxu0 %v325
    %465 = vmatprep.subr.bf16.mxu0 0
    %466 = vmatpush1.bf16.msra.mxu0 %v326
    %467 = vmatprep.subr.bf16.mxu0 0
    %468 = vmatpush1.bf16.msra.mxu0 %v327
    %469 = vmatprep.subr.bf16.mxu0 0
    %470 = vmatpush1.bf16.msra.mxu0 %v328
    %471 = vmatprep.subr.bf16.mxu0 0
    %472 = vmatpush1.bf16.msra.mxu0 %v329
    %473 = vmatprep.subr.bf16.mxu0 0
    %474 = vmatpush1.bf16.msra.mxu0 %v330
    %475 = vmatprep.subr.bf16.mxu0 0
    %476 = vmatpush1.bf16.msra.mxu0 0
    %477 = vmatprep.subr.bf16.mxu0 0
    %478 = vmatpush1.bf16.msra.mxu0 0
    %479 = vmatprep.subr.bf16.mxu0 0
    %480 = vmatpush1.bf16.msra.mxu0 0
    %481 = vmatprep.subr.bf16.mxu0 0
    %482 = vmatpush1.bf16.msra.mxu0 0
    %483 = vmatprep.subr.bf16.mxu0 0
    %484 = vmatpush1.bf16.msra.mxu0 0
    %485 = vmatprep.subr.bf16.mxu0 0
    %486 = vmatpush1.bf16.msra.mxu0 0
    %487 = vmatprep.subr.bf16.mxu0 0
    %488 = vmatpush1.bf16.msra.mxu0 0
    %489 = vmatprep.subr.bf16.mxu0 0
    %490 = vmatpush1.bf16.msra.mxu0 0
    %491 = vmatprep.mubr.bf16.mxu0 0
    %492 = vmatmul.mubr.bf16.gmra.mrb[0].mxu0 %v443
    %v493 = vpop.f32.mrb[0].mxu0
    %v494 = vadd.f32 %v349, %v493
    %v495 = vpop.f32.mrb[0].mxu0
    %v496 = vpop.f32.mrb[0].mxu0
    %v497 = vadd.f32 %v353, %v496
    %v498 = vpop.f32.mrb[0].mxu0
    %499 = vmatprep.mubr.bf16.mxu0 0
    %500 = vmatmul.mubr.bf16.gmra.mrb[0].mxu0 %v444
    %v501 = vpop.f32.mrb[0].mxu0
    %v502 = vadd.f32 %v357, %v501
    %v503 = vpop.f32.mrb[0].mxu0
    %v504 = vpop.f32.mrb[0].mxu0
    %v505 = vadd.f32 %v361, %v504
    %v506 = vpop.f32.mrb[0].mxu0
    %507 = vmatprep.mubr.bf16.mxu0 0
    %508 = vmatmul.mubr.bf16.gmra.mrb[0].mxu0 %v445
    %v509 = vpop.f32.mrb[0].mxu0
    %v510 = vadd.f32 %v365, %v509
    %v511 = vpop.f32.mrb[0].mxu0
    %v512 = vpop.f32.mrb[0].mxu0
    %v513 = vadd.f32 %v369, %v512
    %v514 = vpop.f32.mrb[0].mxu0
    %515 = vmatprep.mubr.bf16.mxu0 0
    %516 = vmatmul.mubr.bf16.gmra.mrb[0].mxu0 %v446
    %v517 = vpop.f32.mrb[0].mxu0
    %v518 = vadd.f32 %v373, %v517
    %v519 = vpop.f32.mrb[0].mxu0
    %v520 = vpop.f32.mrb[0].mxu0
    %v521 = vadd.f32 %v377, %v520
    %v522 = vpop.f32.mrb[0].mxu0
    %523 = vmatprep.mubr.bf16.mxu0 0
    %524 = vmatmul.mubr.bf16.gmra.mrb[0].mxu0 %v447
    %v525 = vpop.f32.mrb[0].mxu0
    %v526 = vadd.f32 %v381, %v525
    %v527 = vpop.f32.mrb[0].mxu0
    %v528 = vpop.f32.mrb[0].mxu0
    %v529 = vadd.f32 %v385, %v528
    %v530 = vpop.f32.mrb[0].mxu0
    %531 = vmatprep.mubr.bf16.mxu0 0
    %532 = vmatmul.mubr.bf16.gmra.mrb[0].mxu0 %v448
    %v533 = vpop.f32.mrb[0].mxu0
    %v534 = vadd.f32 %v389, %v533
    %v535 = vpop.f32.mrb[0].mxu0
    %v536 = vpop.f32.mrb[0].mxu0
    %v537 = vadd.f32 %v393, %v536
    %v538 = vpop.f32.mrb[0].mxu0
    %539 = vmatprep.mubr.bf16.mxu0 0
    %540 = vmatmul.mubr.bf16.gmra.mrb[0].mxu0 %v449
    %v541 = vpop.f32.mrb[0].mxu0
    %v542 = vadd.f32 %v397, %v541
    %v543 = vpop.f32.mrb[0].mxu0
    %v544 = vpop.f32.mrb[0].mxu0
    %v545 = vadd.f32 %v401, %v544
    %v546 = vpop.f32.mrb[0].mxu0
    %547 = vmatprep.mubr.bf16.mxu0 0
    %548 = vmatmul.mubr.bf16.gmra.mrb[0].mxu0 %v450
    %v549 = vpop.f32.mrb[0].mxu0
    %v550 = vadd.f32 %v405, %v549
    %v551 = vpop.f32.mrb[0].mxu0
    %v552 = vpop.f32.mrb[0].mxu0
    %v553 = vadd.f32 %v409, %v552
    %v554 = vpop.f32.mrb[0].mxu0
    %555 = vdwg.mxu0
    %v556 = vmax.f32 %v494, 0.0
    %v557 = vmax.f32 %v497, 0.0
    %v558 = vmax.f32 %v502, 0.0
    %v559 = vmax.f32 %v505, 0.0
    %v560 = vmax.f32 %v510, 0.0
    %v561 = vmax.f32 %v513, 0.0
    %v562 = vmax.f32 %v518, 0.0
    %v563 = vmax.f32 %v521, 0.0
    %v564 = vmax.f32 %v526, 0.0
    %v565 = vmax.f32 %v529, 0.0
    %v566 = vmax.f32 %v534, 0.0
    %v567 = vmax.f32 %v537, 0.0
    %v568 = vmax.f32 %v542, 0.0
    %v569 = vmax.f32 %v545, 0.0
    %v570 = vmax.f32 %v550, 0.0
    %v571 = vmax.f32 %v553, 0.0
    %v572 = vpack.c.bf16 %v557, %v556
    %v573 = vpack.c.bf16 %v559, %v558
    %v574 = vpack.c.bf16 %v561, %v560
    %v575 = vpack.c.bf16 %v563, %v562
    %v576 = vpack.c.bf16 %v565, %v564
    %v577 = vpack.c.bf16 %v567, %v566
    %v578 = vpack.c.bf16 %v569, %v568
    %v579 = vpack.c.bf16 %v571, %v570
    %v580 = vld [vmem:[%s3] sm:$0xf]
    %581 = vmatprep.subr.bf16.mxu0 0
    %582 = vmatpush1.bf16.msra.mxu0 %v572
    %583 = vmatprep.subr.bf16.mxu0 0
    %584 = vmatpush1.bf16.msra.mxu0 %v573
    %585 = vmatprep.subr.bf16.mxu0 0
    %586 = vmatpush1.bf16.msra.mxu0 %v574
    %587 = vmatprep.subr.bf16.mxu0 0
    %588 = vmatpush1.bf16.msra.mxu0 %v575
    %589 = vmatprep.subr.bf16.mxu0 0
    %590 = vmatpush1.bf16.msra.mxu0 %v576
    %591 = vmatprep.subr.bf16.mxu0 0
    %592 = vmatpush1.bf16.msra.mxu0 %v577
    %593 = vmatprep.subr.bf16.mxu0 0
    %594 = vmatpush1.bf16.msra.mxu0 %v578
    %595 = vmatprep.subr.bf16.mxu0 0
    %596 = vmatpush1.bf16.msra.mxu0 %v579
    %597 = vmatprep.subr.bf16.mxu0 0
    %598 = vmatpush1.bf16.msra.mxu0 0
    %599 = vmatprep.subr.bf16.mxu0 0
    %600 = vmatpush1.bf16.msra.mxu0 0
    %601 = vmatprep.subr.bf16.mxu0 0
    %602 = vmatpush1.bf16.msra.mxu0 0
    %603 = vmatprep.subr.bf16.mxu0 0
    %604 = vmatpush1.bf16.msra.mxu0 0
    %605 = vmatprep.subr.bf16.mxu0 0
    %606 = vmatpush1.bf16.msra.mxu0 0
    %607 = vmatprep.subr.bf16.mxu0 0
    %608 = vmatpush1.bf16.msra.mxu0 0
    %609 = vmatprep.subr.bf16.mxu0 0
    %610 = vmatpush1.bf16.msra.mxu0 0
    %611 = vmatprep.subr.bf16.mxu0 0
    %612 = vmatpush1.bf16.msra.mxu0 0
    %613 = vmatprep.mubr.bf16.mxu0 0
    %614 = vmatmul.mubr.bf16.gmra.mrb[0].mxu0 %v580
    %v615 = vpop.f32.mrb[0].mxu0
    %v616 = vadd.f32 0.0, %v615
    %v617 = vpop.f32.mrb[0].mxu0
    %v618 = vpop.f32.mrb[0].mxu0
    %v619 = vpop.f32.mrb[0].mxu0
    %620 = vdwg.mxu0
    %621 = vst [vmem:[#allocation2] sm:$0x1] %v616
    // Predicated region
    $region22: #{tpu_custom_call.1} parent=1 // pred_check
      _
    $region23: #{tpu_custom_call.1} parent=1 // pred_check_branch
      %623 = sbr.rel (0) target = $region25
    $region24: #{tpu_custom_call.1} parent=1 // pred_region
      %s625 = ssub.s32 16, 16
      %626 = vsyncadd [#allocation3], %s625
      %s628 = sshll.u32 [#allocation2], 4
      %s629 = int_to_ptr.vmem [resolvable:$true] %s628
      %631 = dma.vmem_to_hbm [thread:$0]  %s629, 16, %s5, [#allocation3]
    $region25: #{tpu_custom_call.1} parent=1 // pred_fallthru
      _
    // Predicated region
    $region26: #{tpu_custom_call.1} parent=1 // pred_check
      _
    $region27: #{tpu_custom_call.1} parent=1 // pred_check_branch
      %633 = sbr.rel (0) target = $region29
    $region28: #{tpu_custom_call.1} parent=1 // pred_region
      %634 = dma.done [#allocation3], 16
    $region29: #{tpu_custom_call.1} parent=1 // pred_fallthru
      _
    %635 = vsyncpa [#allocation3], 1

</llo_original>
